<compile_context>
chip_gen: v7x
topology: tpu7x:2x2x1
jax: 0.10.0
libtpu: 0.0.40
codegen_flags: <defaults>
</compile_context>

<pallas_src>
import jax
import jax.numpy as jnp
from jax.experimental import pallas as pl
from jax.experimental.pallas import tpu as pltpu


_MAX_LANES = 32768       # lane cap (raised from 8192; the VMEM budget usually binds first)
_MAX_BATCH_FOLD = 32     # bound on in-kernel unrolling over folded batch samples


def _netlin_kernel(x_ref, w_ref, o_ref):
    # x_ref: (Nb, Cin, TL)   lane-dense spatial slab(s), Nb samples
    # w_ref: (Cout, Cin)     1x1-conv weight, resident in VMEM (constant index_map)
    # o_ref: (Nb, Cout, TL)
    w = w_ref[...]
    for b in range(x_ref.shape[0]):        # Nb is a small, static block dim -> unrolled
        o_ref[b, :, :] = jnp.dot(
            w,
            x_ref[b, :, :],
            precision=jax.lax.Precision.HIGHEST,
            preferred_element_type=jnp.float32,
        ).astype(o_ref.dtype)


def _vmem_budgets():
    """Generation-aware (block_budget_bytes, vmem_limit_bytes).

    The block budget already counts Pallas double-buffering of the in/out blocks and
    leaves >=25% headroom under the requested scoped-VMEM limit for the weight buffers
    and compiler scratch.
      v5e / v6e (128 MiB physical VMEM) -> ~45 MiB budget, ~67 MiB limit
      v7x       ( 64 MiB physical VMEM) -> ~22 MiB budget, ~34 MiB limit
    Falls back to a conservative 12 MiB / 24 MiB if the hardware query fails.
    """
    try:
        vmem_cap = int(pltpu.get_tpu_info().vmem_capacity_bytes)
    except Exception:
        vmem_cap = 0
    if vmem_cap <= 0:
        return 12 * 1024 * 1024, 24 * 1024 * 1024
    budget = min(48 * 1024 * 1024, max(12 * 1024 * 1024, (vmem_cap * 35) // 100))
    limit = min((vmem_cap * 3) // 4, budget + budget // 2)
    limit = max(limit, budget + 4 * 1024 * 1024)
    return int(budget), int(limit)


def _choose_blocking(N, Cin, Cout, HW, itemsize, budget):
    """Pick (Nb, TL): batch samples folded per grid step and the spatial tile size."""
    per_lane = 2 * (Cin + Cout) * itemsize           # x2: Pallas double-buffers blocks
    max_tl = max(128, (budget // per_lane) // 128 * 128)
    max_tl = min(max_tl, _MAX_LANES)
    if HW > max_tl:
        return 1, max_tl                             # tile the spatial axis, 1 sample/step
    # Whole feature map fits in one lane-dense slab: fold several batch samples per grid
    # step so small (deep-layer) maps are not dominated by the fixed per-step overhead.
    per_sample = per_lane * HW
    nb = max(1, min(N, _MAX_BATCH_FOLD, budget // max(per_sample, 1)))
    while N % nb:                                    # keep batch blocks exact (no ragged edge)
        nb -= 1
    return nb, HW


def net_lin_layer(x, weight, *, low_precision=False):
    """NetLinLayer forward pass (bias-free 1x1 conv; eval-mode dropout = identity).

    x:      (N, Cin, H, W)
    weight: (Cout, Cin) or (Cout, Cin, 1, 1)
    low_precision: optionally cast x/weight to bf16 (halves HBM read traffic for this
      HBM-bound op); accumulation stays f32 and the output keeps x's dtype.
    returns (N, Cout, H, W) in x.dtype
    """
    # TODO(synk): training-mode nn.Dropout (random masking/scaling) not implemented;
    #             inference-mode dropout is identity, matching module.eval() semantics.
    if weight.ndim == 4:
        weight = weight[:, :, 0, 0]
    N, Cin, H, W = x.shape
    Cout = weight.shape[0]
    HW = H * W
    out_dtype = x.dtype

    xf = x.reshape(N, Cin, HW)                       # free reshape of contiguous NCHW
    if low_precision:
        xf = xf.astype(jnp.bfloat16)
    w = weight.astype(xf.dtype)

    budget, vmem_limit = _vmem_budgets()
    nb, tl = _choose_blocking(N, Cin, Cout, HW, xf.dtype.itemsize, budget)
    n_tiles = pl.cdiv(HW, tl)

    cost = pl.CostEstimate(
        flops=2 * N * Cout * Cin * HW,
        transcendentals=0,
        bytes_accessed=(N * Cin * HW) * xf.dtype.itemsize
        + (N * Cout * HW) * jnp.dtype(out_dtype).itemsize
        + Cout * Cin * w.dtype.itemsize,
    )

    out = pl.pallas_call(
        _netlin_kernel,
        out_shape=jax.ShapeDtypeStruct((N, Cout, HW), out_dtype),
        grid=(N // nb, n_tiles),
        in_specs=[
            # nb samples, all channels, one lane-dense spatial tile -> (nb, Cin, tl)
            pl.BlockSpec((nb, Cin, tl), lambda b, t: (b, 0, t)),
            # Full weight, fetched once (constant block index).  pipeline_mode=
            # pl.Buffered(1) would single-buffer it, but the buffer is tiny (Cout*Cin
            # elements) so we keep the default for robustness.
            pl.BlockSpec((Cout, Cin), lambda b, t: (0, 0)),
        ],
        out_specs=pl.BlockSpec((nb, Cout, tl), lambda b, t: (b, 0, t)),
        compiler_params=pltpu.CompilerParams(
            # TODO(synk): on v7x, confirm in a trace that both TensorCores get grid
            # steps; if not, move the batch axis to pltpu.CORE_PARALLEL / pl.core_map.
            dimension_semantics=("parallel", "parallel"),
            vmem_limit_bytes=vmem_limit,
        ),
        cost_estimate=cost,
    )(xf, w)

    return out.reshape(N, Cout, H, W)


def _reference(x, weight):
    if weight.ndim == 4:
        weight = weight[:, :, 0, 0]
    return jnp.einsum(
        "oc,nchw->nohw", weight, x,
        precision=jax.lax.Precision.HIGHEST,
        preferred_element_type=jnp.float32,
    ).astype(x.dtype)


if __name__ == "__main__":
    key = jax.random.PRNGKey(0)
    kx1, kw1, kx2, kw2 = jax.random.split(key, 4)

    # Case 1: NCHW input, 1x1 conv Cin -> Cout=1 (128-aligned spatial, batch folding).
    N, Cin, Cout, H, W = 2, 4, 1, 16, 16
    x1 = jax.random.normal(kx1, (N, Cin, H, W), dtype=jnp.float32)
    w1 = jax.random.normal(kw1, (Cout, Cin), dtype=jnp.float32) * 0.5
    out1 = jax.block_until_ready(net_lin_layer(x1, w1))
    ref1 = _reference(x1, w1)
    assert out1.shape == (N, Cout, H, W) and out1.dtype == x1.dtype
    assert jnp.allclose(out1, ref1, rtol=1e-5, atol=1e-5)

    # Case 2: non-multiple-of-128 spatial extent (14x14, like deep LPIPS layers) and a
    # batch size that exercises the batch-folding path.
    N2, Cin2, Cout2, H2, W2 = 3, 8, 1, 14, 14
    x2 = jax.random.normal(kx2, (N2, Cin2, H2, W2), dtype=jnp.float32)
    w2 = jax.random.normal(kw2, (Cout2, Cin2, 1, 1), dtype=jnp.float32) * 0.5
    out2 = jax.block_until_ready(net_lin_layer(x2, w2))
    ref2 = _reference(x2, w2)
    assert out2.shape == (N2, Cout2, H2, W2) and out2.dtype == x2.dtype
    assert jnp.allclose(out2, ref2, rtol=1e-5, atol=1e-5)

    print("KERNEL_OK")
</pallas_src>

<mosaic_0001>
module attributes {stable_mosaic.version = 11 : i64} {
  func.func @_netlin_kernel(%arg0: i32, %arg1: i32, %arg2: memref<2x4x256xf32, #tpu.memory_space<vmem>>, %arg3: memref<1x4xf32, #tpu.memory_space<vmem>>, %arg4: memref<2x1x256xf32, #tpu.memory_space<vmem>>) attributes {dimension_semantics = [#tpu.dimension_semantics<parallel>, #tpu.dimension_semantics<parallel>], iteration_bounds = array<i64: 1, 1>, scalar_prefetch = 0 : i64, scratch_operands = 0 : i64, tpu.core_type = #tpu.core_type<tc>, window_params = [{transform_indices = @transform_0, window_bounds = array<i64: 2, 4, 256>}, {pipeline_mode = #tpu.pipeline_mode<synchronous>, transform_indices = @transform_1, window_bounds = array<i64: 1, 4>}, {transform_indices = @transform_2, window_bounds = array<i64: 2, 1, 256>}]} {
    %c0 = arith.constant 0 : index
    %c0_0 = arith.constant 0 : index
    %0 = vector.load %arg3[%c0, %c0_0] : memref<1x4xf32, #tpu.memory_space<vmem>>, vector<1x4xf32>
    %c0_1 = arith.constant 0 : index
    %c0_2 = arith.constant 0 : index
    %c0_3 = arith.constant 0 : index
    %1 = vector.load %arg2[%c0_1, %c0_2, %c0_3] : memref<2x4x256xf32, #tpu.memory_space<vmem>>, vector<1x4x256xf32>
    %2 = vector.shape_cast %1 : vector<1x4x256xf32> to vector<4x256xf32>
    %cst = arith.constant dense<0.000000e+00> : vector<1x256xf32>
    %3 = tpu.matmul %0, %2, %cst {dimension_numbers = #tpu.dot_dimension_numbers<[1], [0], [0], [1], [0, 0, 1, 1], [], []>, precision = #tpu.contract_precision<fp32>} : vector<1x4xf32>, vector<4x256xf32>, vector<1x256xf32> -> vector<1x256xf32>
    %c0_4 = arith.constant 0 : index
    %c0_5 = arith.constant 0 : index
    %c0_6 = arith.constant 0 : index
    %4 = vector.load %arg4[%c0_4, %c0_5, %c0_6] : memref<2x1x256xf32, #tpu.memory_space<vmem>>, vector<1x1x256xf32>
    %5 = vector.shape_cast %4 : vector<1x1x256xf32> to vector<1x256xf32>
    %6 = vector.shape_cast %3 : vector<1x256xf32> to vector<1x1x256xf32>
    tpu.vector_store %arg4[%c0_4, %c0_5, %c0_6], %6 {strides = array<i32>} : memref<2x1x256xf32, #tpu.memory_space<vmem>>, vector<1x1x256xf32>,
    %c1 = arith.constant 1 : index
    %c0_7 = arith.constant 0 : index
    %c0_8 = arith.constant 0 : index
    %7 = vector.load %arg2[%c1, %c0_7, %c0_8] : memref<2x4x256xf32, #tpu.memory_space<vmem>>, vector<1x4x256xf32>
    %8 = vector.shape_cast %7 : vector<1x4x256xf32> to vector<4x256xf32>
    %cst_9 = arith.constant dense<0.000000e+00> : vector<1x256xf32>
    %9 = tpu.matmul %0, %8, %cst_9 {dimension_numbers = #tpu.dot_dimension_numbers<[1], [0], [0], [1], [0, 0, 1, 1], [], []>, precision = #tpu.contract_precision<fp32>} : vector<1x4xf32>, vector<4x256xf32>, vector<1x256xf32> -> vector<1x256xf32>
    %c1_10 = arith.constant 1 : index
    %c0_11 = arith.constant 0 : index
    %c0_12 = arith.constant 0 : index
    %10 = vector.load %arg4[%c1_10, %c0_11, %c0_12] : memref<2x1x256xf32, #tpu.memory_space<vmem>>, vector<1x1x256xf32>
    %11 = vector.shape_cast %10 : vector<1x1x256xf32> to vector<1x256xf32>
    %12 = vector.shape_cast %9 : vector<1x256xf32> to vector<1x1x256xf32>
    tpu.vector_store %arg4[%c1_10, %c0_11, %c0_12], %12 {strides = array<i32>} : memref<2x1x256xf32, #tpu.memory_space<vmem>>, vector<1x1x256xf32>,
    return
  }
  func.func @transform_0(%arg0: i32, %arg1: i32) -> (i32, i32, i32) {
    %c0_i32 = arith.constant 0 : i32
    %c0_i32_0 = arith.constant 0 : i32
    return %arg0, %c0_i32, %arg1 : i32, i32, i32
  }
  func.func @transform_1(%arg0: i32, %arg1: i32) -> (i32, i32) {
    %c0_i32 = arith.constant 0 : i32
    %c0_i32_0 = arith.constant 0 : i32
    %c0_i32_1 = arith.constant 0 : i32
    return %c0_i32, %c0_i32_0 : i32, i32
  }
  func.func @transform_2(%arg0: i32, %arg1: i32) -> (i32, i32, i32) {
    %c0_i32 = arith.constant 0 : i32
    %c0_i32_0 = arith.constant 0 : i32
    return %arg0, %c0_i32, %arg1 : i32, i32, i32
  }
}

</mosaic_0001>

<llo_original>
// kernel: tpu_custom_call.1
$region0: #{tpu_custom_call.1}
  #allocation0 [shape = 'u32[]', space=smem, size = 0x4, offset = 0x4, fixed_abs, tag = 'smem constant byte address 0x4 - core index']
  #allocation1 [shape = 'u32[144,128]{1,0:T(1,128)}', space=vmem, size = 0x12000, scoped, tag = 'internal scratch']
  %s0 = inlined_call_operand.hbm [shape: f32[2,4,256], index: 0, kind: input, shape index: {}]
  %s1 = inlined_call_operand.vmem [shape: f32[1,4], index: 1, kind: input, shape index: {}]
  %s2 = inlined_call_operand.hbm [shape: f32[2,1,256], index: 2, kind: output, shape index: {}]
  %s3 = sld [smem:[#allocation0]]
  $region22: #{tpu_custom_call.1} parent=0
    _
  %s5 = ssub.s32 1, %s3
  %s6 = scalar_select 0, %s5, %s3
  $region1: #{tpu_custom_call.1} parent=0
    #allocation2 [shape = 'u8[8192]{0}', space=vmem, size = 0x2000, scoped, tag = 'input window, operand 0, single buffered']
    #allocation3 [shape = 's32[1]{0}', space=sflag, size = 0x4, scoped, tag = 'scoped memory for tpu_custom_call.1']
    #allocation4 [shape = 's32[1]{0}', space=sflag, size = 0x4, scoped, tag = 'scoped memory for tpu_custom_call.1']
    #allocation5 [shape = 'u8[2048]{0}', space=vmem, size = 0x800, scoped, tag = 'output window, operand 0, single buffered']
    %7 = vsyncpa [#allocation3], 0
    %8 = vsyncpa [#allocation4], 0
    // Predicated region
    $region2: #{tpu_custom_call.1} parent=1 // pred_check
      _
    $region3: #{tpu_custom_call.1} parent=1 // pred_check_branch
      %10 = sbr.rel (0) target = $region5
    $region4: #{tpu_custom_call.1} parent=1 // pred_region
      %s12 = ssub.s32 256, 256
      %13 = vsyncadd [#allocation3], %s12
      %s14 = sshll.u32 [#allocation2], 4
      %s15 = int_to_ptr.vmem [resolvable:$true] %s14
      %20 = dma.hbm_to_vmem [thread:$0]  %s0, 256, %s15, [#allocation3], 128, 128, 8
    $region5: #{tpu_custom_call.1} parent=1 // pred_fallthru
      _
    // Predicated region
    $region6: #{tpu_custom_call.1} parent=1 // pred_check
      _
    $region7: #{tpu_custom_call.1} parent=1 // pred_check_branch
      %22 = sbr.rel (0) target = $region9
    $region8: #{tpu_custom_call.1} parent=1 // pred_region
      _
    $region9: #{tpu_custom_call.1} parent=1 // pred_fallthru
      _
    // Predicated region
    $region10: #{tpu_custom_call.1} parent=1 // pred_check
      _
    $region11: #{tpu_custom_call.1} parent=1 // pred_check_branch
      %24 = sbr.rel (0) target = $region13
    $region12: #{tpu_custom_call.1} parent=1 // pred_region
      %25 = dma.done [#allocation3], 256
    $region13: #{tpu_custom_call.1} parent=1 // pred_fallthru
      _
    %v26 = vld [vmem:[%s1] sm:$0x1]
    %v27 = vld [vmem:[#allocation2] sm:$0xff]
    %v29 = vcombine.high %v27, %v27
    %vm30 = vcmask 31744
    %v32 = vsel %vm30, %v26, 0
    %vm34 = vcmask 1043456
    %v35 = vsel %vm34, %v27, 0
    %v37 = vsel %vm34, %v29, 0
    %v39 = vand.u32 %v37, 4294901760
    %40 = vmatprep.subr.mxu0 %v39
    %v41 = vand.u32 %v35, 4294901760
    %42 = vmatpush1.msra.mxu0 %v41
    %43 = vmatprep.subr.mxu0 0.0
    %44 = vmatpush1.msra.mxu0 0.0
    %45 = vmatprep.subr.mxu0 0.0
    %46 = vmatpush1.msra.mxu0 0.0
    %47 = vmatprep.subr.mxu0 0.0
    %48 = vmatpush1.msra.mxu0 0.0
    %49 = vmatprep.subr.mxu0 0.0
    %50 = vmatpush1.msra.mxu0 0.0
    %51 = vmatprep.subr.mxu0 0.0
    %52 = vmatpush1.msra.mxu0 0.0
    %53 = vmatprep.subr.mxu0 0.0
    %54 = vmatpush1.msra.mxu0 0.0
    %55 = vmatprep.subr.mxu0 0.0
    %56 = vmatpush1.msra.mxu0 0.0
    %57 = vmatprep.subr.mxu0 0.0
    %58 = vmatpush1.msra.mxu0 0.0
    %59 = vmatprep.subr.mxu0 0.0
    %60 = vmatpush1.msra.mxu0 0.0
    %61 = vmatprep.subr.mxu0 0.0
    %62 = vmatpush1.msra.mxu0 0.0
    %63 = vmatprep.subr.mxu0 0.0
    %64 = vmatpush1.msra.mxu0 0.0
    %65 = vmatprep.subr.mxu0 0.0
    %66 = vmatpush1.msra.mxu0 0.0
    %67 = vmatprep.subr.mxu0 0.0
    %68 = vmatpush1.msra.mxu0 0.0
    %69 = vmatprep.subr.mxu0 0.0
    %70 = vmatpush1.msra.mxu0 0.0
    %71 = vmatprep.subr.mxu0 0.0
    %72 = vmatpush1.msra.mxu0 0.0
    %73 = vmatprep.subr.mxu0 0.0
    %74 = vmatpush1.msra.mxu0 0.0
    %75 = vmatprep.subr.mxu0 0.0
    %76 = vmatpush1.msra.mxu0 0.0
    %77 = vmatprep.subr.mxu0 0.0
    %78 = vmatpush1.msra.mxu0 0.0
    %79 = vmatprep.subr.mxu0 0.0
    %80 = vmatpush1.msra.mxu0 0.0
    %81 = vmatprep.subr.mxu0 0.0
    %82 = vmatpush1.msra.mxu0 0.0
    %83 = vmatprep.subr.mxu0 0.0
    %84 = vmatpush1.msra.mxu0 0.0
    %85 = vmatprep.subr.mxu0 0.0
    %86 = vmatpush1.msra.mxu0 0.0
    %87 = vmatprep.subr.mxu0 0.0
    %88 = vmatpush1.msra.mxu0 0.0
    %89 = vmatprep.subr.mxu0 0.0
    %90 = vmatpush1.msra.mxu0 0.0
    %91 = vmatprep.subr.mxu0 0.0
    %92 = vmatpush1.msra.mxu0 0.0
    %93 = vmatprep.subr.mxu0 0.0
    %94 = vmatpush1.msra.mxu0 0.0
    %95 = vmatprep.subr.mxu0 0.0
    %96 = vmatpush1.msra.mxu0 0.0
    %97 = vmatprep.subr.mxu0 0.0
    %98 = vmatpush1.msra.mxu0 0.0
    %99 = vmatprep.subr.mxu0 0.0
    %100 = vmatpush1.msra.mxu0 0.0
    %101 = vmatprep.subr.mxu0 0.0
    %102 = vmatpush1.msra.mxu0 0.0
    %103 = vmatprep.subr.mxu0 0.0
    %104 = vmatpush1.msra.mxu0 0.0
    %105 = vmatprep.mubr.f32.mxu0 0.0
    %v106 = vand.u32 %v32, 4294901760
    %v107 = vsub.f32 %v32, %v106
    %v108 = vand.u32 %v107, 4294901760
    %v109 = vsub.f32 %v107, %v108
    %v110 = vand.u32 %v109, 4294901760
    %111 = vmatmul.mubr.f32.gmra.mrb[0].mxu0 %v110
    %v112 = vpop.f32.mrb[0].mxu0
    %v113 = vadd.f32 0.0, %v112
    %v114 = vpop.f32.mrb[0].mxu0
    %v115 = vadd.f32 0.0, %v114
    %116 = vdwg.mxu0
    %v117 = vand.u32 %v37, 4294901760
    %v118 = vsub.f32 %v37, %v117
    %v119 = vand.u32 %v118, 4294901760
    %v120 = vsub.f32 %v118, %v119
    %v121 = vand.u32 %v120, 4294901760
    %122 = vmatprep.subr.mxu0 %v121
    %v123 = vand.u32 %v35, 4294901760
    %v124 = vsub.f32 %v35, %v123
    %v125 = vand.u32 %v124, 4294901760
    %v126 = vsub.f32 %v124, %v125
    %v127 = vand.u32 %v126, 4294901760
    %128 = vmatpush1.msra.mxu0 %v127
    %129 = vmatprep.subr.mxu0 0.0
    %130 = vmatpush1.msra.mxu0 0.0
    %131 = vmatprep.subr.mxu0 0.0
    %132 = vmatpush1.msra.mxu0 0.0
    %133 = vmatprep.subr.mxu0 0.0
    %134 = vmatpush1.msra.mxu0 0.0
    %135 = vmatprep.subr.mxu0 0.0
    %136 = vmatpush1.msra.mxu0 0.0
    %137 = vmatprep.subr.mxu0 0.0
    %138 = vmatpush1.msra.mxu0 0.0
    %139 = vmatprep.subr.mxu0 0.0
    %140 = vmatpush1.msra.mxu0 0.0
    %141 = vmatprep.subr.mxu0 0.0
    %142 = vmatpush1.msra.mxu0 0.0
    %143 = vmatprep.subr.mxu0 0.0
    %144 = vmatpush1.msra.mxu0 0.0
    %145 = vmatprep.subr.mxu0 0.0
    %146 = vmatpush1.msra.mxu0 0.0
    %147 = vmatprep.subr.mxu0 0.0
    %148 = vmatpush1.msra.mxu0 0.0
    %149 = vmatprep.subr.mxu0 0.0
    %150 = vmatpush1.msra.mxu0 0.0
    %151 = vmatprep.subr.mxu0 0.0
    %152 = vmatpush1.msra.mxu0 0.0
    %153 = vmatprep.subr.mxu0 0.0
    %154 = vmatpush1.msra.mxu0 0.0
    %155 = vmatprep.subr.mxu0 0.0
    %156 = vmatpush1.msra.mxu0 0.0
    %157 = vmatprep.subr.mxu0 0.0
    %158 = vmatpush1.msra.mxu0 0.0
    %159 = vmatprep.subr.mxu0 0.0
    %160 = vmatpush1.msra.mxu0 0.0
    %161 = vmatprep.subr.mxu0 0.0
    %162 = vmatpush1.msra.mxu0 0.0
    %163 = vmatprep.subr.mxu0 0.0
    %164 = vmatpush1.msra.mxu0 0.0
    %165 = vmatprep.subr.mxu0 0.0
    %166 = vmatpush1.msra.mxu0 0.0
    %167 = vmatprep.subr.mxu0 0.0
    %168 = vmatpush1.msra.mxu0 0.0
    %169 = vmatprep.subr.mxu0 0.0
    %170 = vmatpush1.msra.mxu0 0.0
    %171 = vmatprep.subr.mxu0 0.0
    %172 = vmatpush1.msra.mxu0 0.0
    %173 = vmatprep.subr.mxu0 0.0
    %174 = vmatpush1.msra.mxu0 0.0
    %175 = vmatprep.subr.mxu0 0.0
    %176 = vmatpush1.msra.mxu0 0.0
    %177 = vmatprep.subr.mxu0 0.0
    %178 = vmatpush1.msra.mxu0 0.0
    %179 = vmatprep.subr.mxu0 0.0
    %180 = vmatpush1.msra.mxu0 0.0
    %181 = vmatprep.subr.mxu0 0.0
    %182 = vmatpush1.msra.mxu0 0.0
    %183 = vmatprep.subr.mxu0 0.0
    %184 = vmatpush1.msra.mxu0 0.0
    %185 = vmatprep.subr.mxu0 0.0
    %186 = vmatpush1.msra.mxu0 0.0
    %187 = vmatprep.subr.mxu0 0.0
    %188 = vmatpush1.msra.mxu0 0.0
    %189 = vmatprep.subr.mxu0 0.0
    %190 = vmatpush1.msra.mxu0 0.0
    %191 = vmatprep.mubr.f32.mxu0 0.0
    %v192 = vand.u32 %v32, 4294901760
    %193 = vmatmul.mubr.f32.gmra.mrb[0].mxu0 %v192
    %v194 = vpop.f32.mrb[0].mxu0
    %v195 = vadd.f32 %v113, %v194
    %v196 = vpop.f32.mrb[0].mxu0
    %v197 = vadd.f32 %v115, %v196
    %198 = vdwg.mxu0
    %v199 = vand.u32 %v37, 4294901760
    %v200 = vsub.f32 %v37, %v199
    %201 = vmatprep.subr.mxu0 %v200
    %v202 = vand.u32 %v35, 4294901760
    %v203 = vsub.f32 %v35, %v202
    %204 = vmatpush1.msra.mxu0 %v203
    %205 = vmatprep.subr.mxu0 0.0
    %206 = vmatpush1.msra.mxu0 0.0
    %207 = vmatprep.subr.mxu0 0.0
    %208 = vmatpush1.msra.mxu0 0.0
    %209 = vmatprep.subr.mxu0 0.0
    %210 = vmatpush1.msra.mxu0 0.0
    %211 = vmatprep.subr.mxu0 0.0
    %212 = vmatpush1.msra.mxu0 0.0
    %213 = vmatprep.subr.mxu0 0.0
    %214 = vmatpush1.msra.mxu0 0.0
    %215 = vmatprep.subr.mxu0 0.0
    %216 = vmatpush1.msra.mxu0 0.0
    %217 = vmatprep.subr.mxu0 0.0
    %218 = vmatpush1.msra.mxu0 0.0
    %219 = vmatprep.subr.mxu0 0.0
    %220 = vmatpush1.msra.mxu0 0.0
    %221 = vmatprep.subr.mxu0 0.0
    %222 = vmatpush1.msra.mxu0 0.0
    %223 = vmatprep.subr.mxu0 0.0
    %224 = vmatpush1.msra.mxu0 0.0
    %225 = vmatprep.subr.mxu0 0.0
    %226 = vmatpush1.msra.mxu0 0.0
    %227 = vmatprep.subr.mxu0 0.0
    %228 = vmatpush1.msra.mxu0 0.0
    %229 = vmatprep.subr.mxu0 0.0
    %230 = vmatpush1.msra.mxu0 0.0
    %231 = vmatprep.subr.mxu0 0.0
    %232 = vmatpush1.msra.mxu0 0.0
    %233 = vmatprep.subr.mxu0 0.0
    %234 = vmatpush1.msra.mxu0 0.0
    %235 = vmatprep.subr.mxu0 0.0
    %236 = vmatpush1.msra.mxu0 0.0
    %237 = vmatprep.subr.mxu0 0.0
    %238 = vmatpush1.msra.mxu0 0.0
    %239 = vmatprep.subr.mxu0 0.0
    %240 = vmatpush1.msra.mxu0 0.0
    %241 = vmatprep.subr.mxu0 0.0
    %242 = vmatpush1.msra.mxu0 0.0
    %243 = vmatprep.subr.mxu0 0.0
    %244 = vmatpush1.msra.mxu0 0.0
    %245 = vmatprep.subr.mxu0 0.0
    %246 = vmatpush1.msra.mxu0 0.0
    %247 = vmatprep.subr.mxu0 0.0
    %248 = vmatpush1.msra.mxu0 0.0
    %249 = vmatprep.subr.mxu0 0.0
    %250 = vmatpush1.msra.mxu0 0.0
    %251 = vmatprep.subr.mxu0 0.0
    %252 = vmatpush1.msra.mxu0 0.0
    %253 = vmatprep.subr.mxu0 0.0
    %254 = vmatpush1.msra.mxu0 0.0
    %255 = vmatprep.subr.mxu0 0.0
    %256 = vmatpush1.msra.mxu0 0.0
    %257 = vmatprep.subr.mxu0 0.0
    %258 = vmatpush1.msra.mxu0 0.0
    %259 = vmatprep.subr.mxu0 0.0
    %260 = vmatpush1.msra.mxu0 0.0
    %261 = vmatprep.subr.mxu0 0.0
    %262 = vmatpush1.msra.mxu0 0.0
    %263 = vmatprep.subr.mxu0 0.0
    %264 = vmatpush1.msra.mxu0 0.0
    %265 = vmatprep.subr.mxu0 0.0
    %266 = vmatpush1.msra.mxu0 0.0
    %267 = vmatprep.mubr.f32.mxu0 0.0
    %v268 = vand.u32 %v32, 4294901760
    %v269 = vsub.f32 %v32, %v268
    %270 = vmatmul.mubr.f32.gmra.mrb[0].mxu0 %v269
    %v271 = vpop.f32.mrb[0].mxu0
    %v272 = vadd.f32 %v195, %v271
    %v273 = vpop.f32.mrb[0].mxu0
    %v274 = vadd.f32 %v197, %v273
    %275 = vdwg.mxu0
    %v276 = vand.u32 %v37, 4294901760
    %277 = vmatprep.subr.mxu0 %v276
    %v278 = vand.u32 %v35, 4294901760
    %279 = vmatpush1.msra.mxu0 %v278
    %280 = vmatprep.subr.mxu0 0.0
    %281 = vmatpush1.msra.mxu0 0.0
    %282 = vmatprep.subr.mxu0 0.0
    %283 = vmatpush1.msra.mxu0 0.0
    %284 = vmatprep.subr.mxu0 0.0
    %285 = vmatpush1.msra.mxu0 0.0
    %286 = vmatprep.subr.mxu0 0.0
    %287 = vmatpush1.msra.mxu0 0.0
    %288 = vmatprep.subr.mxu0 0.0
    %289 = vmatpush1.msra.mxu0 0.0
    %290 = vmatprep.subr.mxu0 0.0
    %291 = vmatpush1.msra.mxu0 0.0
    %292 = vmatprep.subr.mxu0 0.0
    %293 = vmatpush1.msra.mxu0 0.0
    %294 = vmatprep.subr.mxu0 0.0
    %295 = vmatpush1.msra.mxu0 0.0
    %296 = vmatprep.subr.mxu0 0.0
    %297 = vmatpush1.msra.mxu0 0.0
    %298 = vmatprep.subr.mxu0 0.0
    %299 = vmatpush1.msra.mxu0 0.0
    %300 = vmatprep.subr.mxu0 0.0
    %301 = vmatpush1.msra.mxu0 0.0
    %302 = vmatprep.subr.mxu0 0.0
    %303 = vmatpush1.msra.mxu0 0.0
    %304 = vmatprep.subr.mxu0 0.0
    %305 = vmatpush1.msra.mxu0 0.0
    %306 = vmatprep.subr.mxu0 0.0
    %307 = vmatpush1.msra.mxu0 0.0
    %308 = vmatprep.subr.mxu0 0.0
    %309 = vmatpush1.msra.mxu0 0.0
    %310 = vmatprep.subr.mxu0 0.0
    %311 = vmatpush1.msra.mxu0 0.0
    %312 = vmatprep.subr.mxu0 0.0
    %313 = vmatpush1.msra.mxu0 0.0
    %314 = vmatprep.subr.mxu0 0.0
    %315 = vmatpush1.msra.mxu0 0.0
    %316 = vmatprep.subr.mxu0 0.0
    %317 = vmatpush1.msra.mxu0 0.0
    %318 = vmatprep.subr.mxu0 0.0
    %319 = vmatpush1.msra.mxu0 0.0
    %320 = vmatprep.subr.mxu0 0.0
    %321 = vmatpush1.msra.mxu0 0.0
    %322 = vmatprep.subr.mxu0 0.0
    %323 = vmatpush1.msra.mxu0 0.0
    %324 = vmatprep.subr.mxu0 0.0
    %325 = vmatpush1.msra.mxu0 0.0
    %326 = vmatprep.subr.mxu0 0.0
    %327 = vmatpush1.msra.mxu0 0.0
    %328 = vmatprep.subr.mxu0 0.0
    %329 = vmatpush1.msra.mxu0 0.0
    %330 = vmatprep.subr.mxu0 0.0
    %331 = vmatpush1.msra.mxu0 0.0
    %332 = vmatprep.subr.mxu0 0.0
    %333 = vmatpush1.msra.mxu0 0.0
    %334 = vmatprep.subr.mxu0 0.0
    %335 = vmatpush1.msra.mxu0 0.0
    %336 = vmatprep.subr.mxu0 0.0
    %337 = vmatpush1.msra.mxu0 0.0
    %338 = vmatprep.subr.mxu0 0.0
    %339 = vmatpush1.msra.mxu0 0.0
    %340 = vmatprep.subr.mxu0 0.0
    %341 = vmatpush1.msra.mxu0 0.0
    %342 = vmatprep.mubr.f32.mxu0 0.0
    %v343 = vand.u32 %v32, 4294901760
    %v344 = vsub.f32 %v32, %v343
    %v345 = vand.u32 %v344, 4294901760
    %346 = vmatmul.mubr.f32.gmra.mrb[0].mxu0 %v345
    %v347 = vpop.f32.mrb[0].mxu0
    %v348 = vadd.f32 %v272, %v347
    %v349 = vpop.f32.mrb[0].mxu0
    %v350 = vadd.f32 %v274, %v349
    %351 = vdwg.mxu0
    %v352 = vand.u32 %v37, 4294901760
    %v353 = vsub.f32 %v37, %v352
    %v354 = vand.u32 %v353, 4294901760
    %355 = vmatprep.subr.mxu0 %v354
    %v356 = vand.u32 %v35, 4294901760
    %v357 = vsub.f32 %v35, %v356
    %v358 = vand.u32 %v357, 4294901760
    %359 = vmatpush1.msra.mxu0 %v358
    %360 = vmatprep.subr.mxu0 0.0
    %361 = vmatpush1.msra.mxu0 0.0
    %362 = vmatprep.subr.mxu0 0.0
    %363 = vmatpush1.msra.mxu0 0.0
    %364 = vmatprep.subr.mxu0 0.0
    %365 = vmatpush1.msra.mxu0 0.0
    %366 = vmatprep.subr.mxu0 0.0
    %367 = vmatpush1.msra.mxu0 0.0
    %368 = vmatprep.subr.mxu0 0.0
    %369 = vmatpush1.msra.mxu0 0.0
    %370 = vmatprep.subr.mxu0 0.0
    %371 = vmatpush1.msra.mxu0 0.0
    %372 = vmatprep.subr.mxu0 0.0
    %373 = vmatpush1.msra.mxu0 0.0
    %374 = vmatprep.subr.mxu0 0.0
    %375 = vmatpush1.msra.mxu0 0.0
    %376 = vmatprep.subr.mxu0 0.0
    %377 = vmatpush1.msra.mxu0 0.0
    %378 = vmatprep.subr.mxu0 0.0
    %379 = vmatpush1.msra.mxu0 0.0
    %380 = vmatprep.subr.mxu0 0.0
    %381 = vmatpush1.msra.mxu0 0.0
    %382 = vmatprep.subr.mxu0 0.0
    %383 = vmatpush1.msra.mxu0 0.0
    %384 = vmatprep.subr.mxu0 0.0
    %385 = vmatpush1.msra.mxu0 0.0
    %386 = vmatprep.subr.mxu0 0.0
    %387 = vmatpush1.msra.mxu0 0.0
    %388 = vmatprep.subr.mxu0 0.0
    %389 = vmatpush1.msra.mxu0 0.0
    %390 = vmatprep.subr.mxu0 0.0
    %391 = vmatpush1.msra.mxu0 0.0
    %392 = vmatprep.subr.mxu0 0.0
    %393 = vmatpush1.msra.mxu0 0.0
    %394 = vmatprep.subr.mxu0 0.0
    %395 = vmatpush1.msra.mxu0 0.0
    %396 = vmatprep.subr.mxu0 0.0
    %397 = vmatpush1.msra.mxu0 0.0
    %398 = vmatprep.subr.mxu0 0.0
    %399 = vmatpush1.msra.mxu0 0.0
    %400 = vmatprep.subr.mxu0 0.0
    %401 = vmatpush1.msra.mxu0 0.0
    %402 = vmatprep.subr.mxu0 0.0
    %403 = vmatpush1.msra.mxu0 0.0
    %404 = vmatprep.subr.mxu0 0.0
    %405 = vmatpush1.msra.mxu0 0.0
    %406 = vmatprep.subr.mxu0 0.0
    %407 = vmatpush1.msra.mxu0 0.0
    %408 = vmatprep.subr.mxu0 0.0
    %409 = vmatpush1.msra.mxu0 0.0
    %410 = vmatprep.subr.mxu0 0.0
    %411 = vmatpush1.msra.mxu0 0.0
    %412 = vmatprep.subr.mxu0 0.0
    %413 = vmatpush1.msra.mxu0 0.0
    %414 = vmatprep.subr.mxu0 0.0
    %415 = vmatpush1.msra.mxu0 0.0
    %416 = vmatprep.subr.mxu0 0.0
    %417 = vmatpush1.msra.mxu0 0.0
    %418 = vmatprep.subr.mxu0 0.0
    %419 = vmatpush1.msra.mxu0 0.0
    %420 = vmatprep.subr.mxu0 0.0
    %421 = vmatpush1.msra.mxu0 0.0
    %422 = vmatprep.mubr.f32.mxu0 0.0
    %v423 = vand.u32 %v32, 4294901760
    %424 = vmatmul.mubr.f32.gmra.mrb[0].mxu0 %v423
    %v425 = vpop.f32.mrb[0].mxu0
    %v426 = vadd.f32 %v348, %v425
    %v427 = vpop.f32.mrb[0].mxu0
    %v428 = vadd.f32 %v350, %v427
    %429 = vdwg.mxu0
    %v430 = vand.u32 %v37, 4294901760
    %431 = vmatprep.subr.mxu0 %v430
    %v432 = vand.u32 %v35, 4294901760
    %433 = vmatpush1.msra.mxu0 %v432
    %434 = vmatprep.subr.mxu0 0.0
    %435 = vmatpush1.msra.mxu0 0.0
    %436 = vmatprep.subr.mxu0 0.0
    %437 = vmatpush1.msra.mxu0 0.0
    %438 = vmatprep.subr.mxu0 0.0
    %439 = vmatpush1.msra.mxu0 0.0
    %440 = vmatprep.subr.mxu0 0.0
    %441 = vmatpush1.msra.mxu0 0.0
    %442 = vmatprep.subr.mxu0 0.0
    %443 = vmatpush1.msra.mxu0 0.0
    %444 = vmatprep.subr.mxu0 0.0
    %445 = vmatpush1.msra.mxu0 0.0
    %446 = vmatprep.subr.mxu0 0.0
    %447 = vmatpush1.msra.mxu0 0.0
    %448 = vmatprep.subr.mxu0 0.0
    %449 = vmatpush1.msra.mxu0 0.0
    %450 = vmatprep.subr.mxu0 0.0
    %451 = vmatpush1.msra.mxu0 0.0
    %452 = vmatprep.subr.mxu0 0.0
    %453 = vmatpush1.msra.mxu0 0.0
    %454 = vmatprep.subr.mxu0 0.0
    %455 = vmatpush1.msra.mxu0 0.0
    %456 = vmatprep.subr.mxu0 0.0
    %457 = vmatpush1.msra.mxu0 0.0
    %458 = vmatprep.subr.mxu0 0.0
    %459 = vmatpush1.msra.mxu0 0.0
    %460 = vmatprep.subr.mxu0 0.0
    %461 = vmatpush1.msra.mxu0 0.0
    %462 = vmatprep.subr.mxu0 0.0
    %463 = vmatpush1.msra.mxu0 0.0
    %464 = vmatprep.subr.mxu0 0.0
    %465 = vmatpush1.msra.mxu0 0.0
    %466 = vmatprep.subr.mxu0 0.0
    %467 = vmatpush1.msra.mxu0 0.0
    %468 = vmatprep.subr.mxu0 0.0
    %469 = vmatpush1.msra.mxu0 0.0
    %470 = vmatprep.subr.mxu0 0.0
    %471 = vmatpush1.msra.mxu0 0.0
    %472 = vmatprep.subr.mxu0 0.0
    %473 = vmatpush1.msra.mxu0 0.0
    %474 = vmatprep.subr.mxu0 0.0
    %475 = vmatpush1.msra.mxu0 0.0
    %476 = vmatprep.subr.mxu0 0.0
    %477 = vmatpush1.msra.mxu0 0.0
    %478 = vmatprep.subr.mxu0 0.0
    %479 = vmatpush1.msra.mxu0 0.0
    %480 = vmatprep.subr.mxu0 0.0
    %481 = vmatpush1.msra.mxu0 0.0
    %482 = vmatprep.subr.mxu0 0.0
    %483 = vmatpush1.msra.mxu0 0.0
    %484 = vmatprep.subr.mxu0 0.0
    %485 = vmatpush1.msra.mxu0 0.0
    %486 = vmatprep.subr.mxu0 0.0
    %487 = vmatpush1.msra.mxu0 0.0
    %488 = vmatprep.subr.mxu0 0.0
    %489 = vmatpush1.msra.mxu0 0.0
    %490 = vmatprep.subr.mxu0 0.0
    %491 = vmatpush1.msra.mxu0 0.0
    %492 = vmatprep.subr.mxu0 0.0
    %493 = vmatpush1.msra.mxu0 0.0
    %494 = vmatprep.subr.mxu0 0.0
    %495 = vmatpush1.msra.mxu0 0.0
    %496 = vmatprep.mubr.f32.mxu0 0.0
    %v497 = vand.u32 %v32, 4294901760
    %498 = vmatmul.mubr.f32.gmra.mrb[0].mxu0 %v497
    %v499 = vpop.f32.mrb[0].mxu0
    %v500 = vadd.f32 %v426, %v499
    %v501 = vpop.f32.mrb[0].mxu0
    %v502 = vadd.f32 %v428, %v501
    %503 = vdwg.mxu0
    %v506 = vcombine.low %v500, %v502
    %v508 = vunpack.c.l.s4 1966171168
    %v509 = vunpack.c.0.s8 %v508
    %v510 = vlaneseq
    %v511 = vshrl.u32 %v510, 7
    %v512 = vsub.s32 %v509, %v511
    %v513 = vrot.slane %v506, %v512
    %v515 = vunpack.c.l.s4 1966171168
    %v516 = vunpack.c.0.s8 %v515
    %v517 = vlaneseq
    %v518 = vshrl.u32 %v517, 7
    %v519 = vsub.s32 %v516, %v518
    %v520 = vrot.slane %v513, %v519
    %v522 = vlaneseq
    %vm523 = vcmp.ge.s32.totalorder %v522, 0
    %vm524 = vcmp.lt.s32.totalorder %v522, 256
    %vm525 = vmand %vm523, %vm524
    %526 = vst.msk [vmem:[#allocation5] sm:$0x3] %vm525, %v520
    %s527 = scalar_lea.vmem [#allocation2], 8
    %v528 = vld [vmem:[%s527] sm:$0xff]
    %v530 = vcombine.high %v528, %v528
    %v531 = vsel %vm34, %v528, 0
    %v533 = vsel %vm34, %v530, 0
    %v535 = vand.u32 %v533, 4294901760
    %536 = vmatprep.subr.mxu0 %v535
    %v537 = vand.u32 %v531, 4294901760
    %538 = vmatpush1.msra.mxu0 %v537
    %539 = vmatprep.subr.mxu0 0.0
    %540 = vmatpush1.msra.mxu0 0.0
    %541 = vmatprep.subr.mxu0 0.0
    %542 = vmatpush1.msra.mxu0 0.0
    %543 = vmatprep.subr.mxu0 0.0
    %544 = vmatpush1.msra.mxu0 0.0
    %545 = vmatprep.subr.mxu0 0.0
    %546 = vmatpush1.msra.mxu0 0.0
    %547 = vmatprep.subr.mxu0 0.0
    %548 = vmatpush1.msra.mxu0 0.0
    %549 = vmatprep.subr.mxu0 0.0
    %550 = vmatpush1.msra.mxu0 0.0
    %551 = vmatprep.subr.mxu0 0.0
    %552 = vmatpush1.msra.mxu0 0.0
    %553 = vmatprep.subr.mxu0 0.0
    %554 = vmatpush1.msra.mxu0 0.0
    %555 = vmatprep.subr.mxu0 0.0
    %556 = vmatpush1.msra.mxu0 0.0
    %557 = vmatprep.subr.mxu0 0.0
    %558 = vmatpush1.msra.mxu0 0.0
    %559 = vmatprep.subr.mxu0 0.0
    %560 = vmatpush1.msra.mxu0 0.0
    %561 = vmatprep.subr.mxu0 0.0
    %562 = vmatpush1.msra.mxu0 0.0
    %563 = vmatprep.subr.mxu0 0.0
    %564 = vmatpush1.msra.mxu0 0.0
    %565 = vmatprep.subr.mxu0 0.0
    %566 = vmatpush1.msra.mxu0 0.0
    %567 = vmatprep.subr.mxu0 0.0
    %568 = vmatpush1.msra.mxu0 0.0
    %569 = vmatprep.subr.mxu0 0.0
    %570 = vmatpush1.msra.mxu0 0.0
    %571 = vmatprep.subr.mxu0 0.0
    %572 = vmatpush1.msra.mxu0 0.0
    %573 = vmatprep.subr.mxu0 0.0
    %574 = vmatpush1.msra.mxu0 0.0
    %575 = vmatprep.subr.mxu0 0.0
    %576 = vmatpush1.msra.mxu0 0.0
    %577 = vmatprep.subr.mxu0 0.0
    %578 = vmatpush1.msra.mxu0 0.0
    %579 = vmatprep.subr.mxu0 0.0
    %580 = vmatpush1.msra.mxu0 0.0
    %581 = vmatprep.subr.mxu0 0.0
    %582 = vmatpush1.msra.mxu0 0.0
    %583 = vmatprep.subr.mxu0 0.0
    %584 = vmatpush1.msra.mxu0 0.0
    %585 = vmatprep.subr.mxu0 0.0
    %586 = vmatpush1.msra.mxu0 0.0
    %587 = vmatprep.subr.mxu0 0.0
    %588 = vmatpush1.msra.mxu0 0.0
    %589 = vmatprep.subr.mxu0 0.0
    %590 = vmatpush1.msra.mxu0 0.0
    %591 = vmatprep.subr.mxu0 0.0
    %592 = vmatpush1.msra.mxu0 0.0
    %593 = vmatprep.subr.mxu0 0.0
    %594 = vmatpush1.msra.mxu0 0.0
    %595 = vmatprep.subr.mxu0 0.0
    %596 = vmatpush1.msra.mxu0 0.0
    %597 = vmatprep.subr.mxu0 0.0
    %598 = vmatpush1.msra.mxu0 0.0
    %599 = vmatprep.subr.mxu0 0.0
    %600 = vmatpush1.msra.mxu0 0.0
    %601 = vmatprep.mubr.f32.mxu0 0.0
    %v602 = vand.u32 %v32, 4294901760
    %v603 = vsub.f32 %v32, %v602
    %v604 = vand.u32 %v603, 4294901760
    %v605 = vsub.f32 %v603, %v604
    %v606 = vand.u32 %v605, 4294901760
    %607 = vmatmul.mubr.f32.gmra.mrb[0].mxu0 %v606
    %v608 = vpop.f32.mrb[0].mxu0
    %v609 = vadd.f32 0.0, %v608
    %v610 = vpop.f32.mrb[0].mxu0
    %v611 = vadd.f32 0.0, %v610
    %612 = vdwg.mxu0
    %v613 = vand.u32 %v533, 4294901760
    %v614 = vsub.f32 %v533, %v613
    %v615 = vand.u32 %v614, 4294901760
    %v616 = vsub.f32 %v614, %v615
    %v617 = vand.u32 %v616, 4294901760
    %618 = vmatprep.subr.mxu0 %v617
    %v619 = vand.u32 %v531, 4294901760
    %v620 = vsub.f32 %v531, %v619
    %v621 = vand.u32 %v620, 4294901760
    %v622 = vsub.f32 %v620, %v621
    %v623 = vand.u32 %v622, 4294901760
    %624 = vmatpush1.msra.mxu0 %v623
    %625 = vmatprep.subr.mxu0 0.0
    %626 = vmatpush1.msra.mxu0 0.0
    %627 = vmatprep.subr.mxu0 0.0
    %628 = vmatpush1.msra.mxu0 0.0
    %629 = vmatprep.subr.mxu0 0.0
    %630 = vmatpush1.msra.mxu0 0.0
    %631 = vmatprep.subr.mxu0 0.0
    %632 = vmatpush1.msra.mxu0 0.0
    %633 = vmatprep.subr.mxu0 0.0
    %634 = vmatpush1.msra.mxu0 0.0
    %635 = vmatprep.subr.mxu0 0.0
    %636 = vmatpush1.msra.mxu0 0.0
    %637 = vmatprep.subr.mxu0 0.0
    %638 = vmatpush1.msra.mxu0 0.0
    %639 = vmatprep.subr.mxu0 0.0
    %640 = vmatpush1.msra.mxu0 0.0
    %641 = vmatprep.subr.mxu0 0.0
    %642 = vmatpush1.msra.mxu0 0.0
    %643 = vmatprep.subr.mxu0 0.0
    %644 = vmatpush1.msra.mxu0 0.0
    %645 = vmatprep.subr.mxu0 0.0
    %646 = vmatpush1.msra.mxu0 0.0
    %647 = vmatprep.subr.mxu0 0.0
    %648 = vmatpush1.msra.mxu0 0.0
    %649 = vmatprep.subr.mxu0 0.0
    %650 = vmatpush1.msra.mxu0 0.0
    %651 = vmatprep.subr.mxu0 0.0
    %652 = vmatpush1.msra.mxu0 0.0
    %653 = vmatprep.subr.mxu0 0.0
    %654 = vmatpush1.msra.mxu0 0.0
    %655 = vmatprep.subr.mxu0 0.0
    %656 = vmatpush1.msra.mxu0 0.0
    %657 = vmatprep.subr.mxu0 0.0
    %658 = vmatpush1.msra.mxu0 0.0
    %659 = vmatprep.subr.mxu0 0.0
    %660 = vmatpush1.msra.mxu0 0.0
    %661 = vmatprep.subr.mxu0 0.0
    %662 = vmatpush1.msra.mxu0 0.0
    %663 = vmatprep.subr.mxu0 0.0
    %664 = vmatpush1.msra.mxu0 0.0
    %665 = vmatprep.subr.mxu0 0.0
    %666 = vmatpush1.msra.mxu0 0.0
    %667 = vmatprep.subr.mxu0 0.0
    %668 = vmatpush1.msra.mxu0 0.0
    %669 = vmatprep.subr.mxu0 0.0
    %670 = vmatpush1.msra.mxu0 0.0
    %671 = vmatprep.subr.mxu0 0.0
    %672 = vmatpush1.msra.mxu0 0.0
    %673 = vmatprep.subr.mxu0 0.0
    %674 = vmatpush1.msra.mxu0 0.0
    %675 = vmatprep.subr.mxu0 0.0
    %676 = vmatpush1.msra.mxu0 0.0
    %677 = vmatprep.subr.mxu0 0.0
    %678 = vmatpush1.msra.mxu0 0.0
    %679 = vmatprep.subr.mxu0 0.0
    %680 = vmatpush1.msra.mxu0 0.0
    %681 = vmatprep.subr.mxu0 0.0
    %682 = vmatpush1.msra.mxu0 0.0
    %683 = vmatprep.subr.mxu0 0.0
    %684 = vmatpush1.msra.mxu0 0.0
    %685 = vmatprep.subr.mxu0 0.0
    %686 = vmatpush1.msra.mxu0 0.0
    %687 = vmatprep.mubr.f32.mxu0 0.0
    %v688 = vand.u32 %v32, 4294901760
    %689 = vmatmul.mubr.f32.gmra.mrb[0].mxu0 %v688
    %v690 = vpop.f32.mrb[0].mxu0
    %v691 = vadd.f32 %v609, %v690
    %v692 = vpop.f32.mrb[0].mxu0
    %v693 = vadd.f32 %v611, %v692
    %694 = vdwg.mxu0
    %v695 = vand.u32 %v533, 4294901760
    %v696 = vsub.f32 %v533, %v695
    %697 = vmatprep.subr.mxu0 %v696
    %v698 = vand.u32 %v531, 4294901760
    %v699 = vsub.f32 %v531, %v698
    %700 = vmatpush1.msra.mxu0 %v699
    %701 = vmatprep.subr.mxu0 0.0
    %702 = vmatpush1.msra.mxu0 0.0
    %703 = vmatprep.subr.mxu0 0.0
    %704 = vmatpush1.msra.mxu0 0.0
    %705 = vmatprep.subr.mxu0 0.0
    %706 = vmatpush1.msra.mxu0 0.0
    %707 = vmatprep.subr.mxu0 0.0
    %708 = vmatpush1.msra.mxu0 0.0
    %709 = vmatprep.subr.mxu0 0.0
    %710 = vmatpush1.msra.mxu0 0.0
    %711 = vmatprep.subr.mxu0 0.0
    %712 = vmatpush1.msra.mxu0 0.0
    %713 = vmatprep.subr.mxu0 0.0
    %714 = vmatpush1.msra.mxu0 0.0
    %715 = vmatprep.subr.mxu0 0.0
    %716 = vmatpush1.msra.mxu0 0.0
    %717 = vmatprep.subr.mxu0 0.0
    %718 = vmatpush1.msra.mxu0 0.0
    %719 = vmatprep.subr.mxu0 0.0
    %720 = vmatpush1.msra.mxu0 0.0
    %721 = vmatprep.subr.mxu0 0.0
    %722 = vmatpush1.msra.mxu0 0.0
    %723 = vmatprep.subr.mxu0 0.0
    %724 = vmatpush1.msra.mxu0 0.0
    %725 = vmatprep.subr.mxu0 0.0
    %726 = vmatpush1.msra.mxu0 0.0
    %727 = vmatprep.subr.mxu0 0.0
    %728 = vmatpush1.msra.mxu0 0.0
    %729 = vmatprep.subr.mxu0 0.0
    %730 = vmatpush1.msra.mxu0 0.0
    %731 = vmatprep.subr.mxu0 0.0
    %732 = vmatpush1.msra.mxu0 0.0
    %733 = vmatprep.subr.mxu0 0.0
    %734 = vmatpush1.msra.mxu0 0.0
    %735 = vmatprep.subr.mxu0 0.0
    %736 = vmatpush1.msra.mxu0 0.0
    %737 = vmatprep.subr.mxu0 0.0
    %738 = vmatpush1.msra.mxu0 0.0
    %739 = vmatprep.subr.mxu0 0.0
    %740 = vmatpush1.msra.mxu0 0.0
    %741 = vmatprep.subr.mxu0 0.0
    %742 = vmatpush1.msra.mxu0 0.0
    %743 = vmatprep.subr.mxu0 0.0
    %744 = vmatpush1.msra.mxu0 0.0
    %745 = vmatprep.subr.mxu0 0.0
    %746 = vmatpush1.msra.mxu0 0.0
    %747 = vmatprep.subr.mxu0 0.0
    %748 = vmatpush1.msra.mxu0 0.0
    %749 = vmatprep.subr.mxu0 0.0
    %750 = vmatpush1.msra.mxu0 0.0
    %751 = vmatprep.subr.mxu0 0.0
    %752 = vmatpush1.msra.mxu0 0.0
    %753 = vmatprep.subr.mxu0 0.0
    %754 = vmatpush1.msra.mxu0 0.0
    %755 = vmatprep.subr.mxu0 0.0
    %756 = vmatpush1.msra.mxu0 0.0
    %757 = vmatprep.subr.mxu0 0.0
    %758 = vmatpush1.msra.mxu0 0.0
    %759 = vmatprep.subr.mxu0 0.0
    %760 = vmatpush1.msra.mxu0 0.0
    %761 = vmatprep.subr.mxu0 0.0
    %762 = vmatpush1.msra.mxu0 0.0
    %763 = vmatprep.mubr.f32.mxu0 0.0
    %v764 = vand.u32 %v32, 4294901760
    %v765 = vsub.f32 %v32, %v764
    %766 = vmatmul.mubr.f32.gmra.mrb[0].mxu0 %v765
    %v767 = vpop.f32.mrb[0].mxu0
    %v768 = vadd.f32 %v691, %v767
    %v769 = vpop.f32.mrb[0].mxu0
    %v770 = vadd.f32 %v693, %v769
    %771 = vdwg.mxu0
    %v772 = vand.u32 %v533, 4294901760
    %773 = vmatprep.subr.mxu0 %v772
    %v774 = vand.u32 %v531, 4294901760
    %775 = vmatpush1.msra.mxu0 %v774
    %776 = vmatprep.subr.mxu0 0.0
    %777 = vmatpush1.msra.mxu0 0.0
    %778 = vmatprep.subr.mxu0 0.0
    %779 = vmatpush1.msra.mxu0 0.0
    %780 = vmatprep.subr.mxu0 0.0
    %781 = vmatpush1.msra.mxu0 0.0
    %782 = vmatprep.subr.mxu0 0.0
    %783 = vmatpush1.msra.mxu0 0.0
    %784 = vmatprep.subr.mxu0 0.0
    %785 = vmatpush1.msra.mxu0 0.0
    %786 = vmatprep.subr.mxu0 0.0
    %787 = vmatpush1.msra.mxu0 0.0
    %788 = vmatprep.subr.mxu0 0.0
    %789 = vmatpush1.msra.mxu0 0.0
    %790 = vmatprep.subr.mxu0 0.0
    %791 = vmatpush1.msra.mxu0 0.0
    %792 = vmatprep.subr.mxu0 0.0
    %793 = vmatpush1.msra.mxu0 0.0
    %794 = vmatprep.subr.mxu0 0.0
    %795 = vmatpush1.msra.mxu0 0.0
    %796 = vmatprep.subr.mxu0 0.0
    %797 = vmatpush1.msra.mxu0 0.0
    %798 = vmatprep.subr.mxu0 0.0
    %799 = vmatpush1.msra.mxu0 0.0
    %800 = vmatprep.subr.mxu0 0.0
    %801 = vmatpush1.msra.mxu0 0.0
    %802 = vmatprep.subr.mxu0 0.0
    %803 = vmatpush1.msra.mxu0 0.0
    %804 = vmatprep.subr.mxu0 0.0
    %805 = vmatpush1.msra.mxu0 0.0
    %806 = vmatprep.subr.mxu0 0.0
    %807 = vmatpush1.msra.mxu0 0.0
    %808 = vmatprep.subr.mxu0 0.0
    %809 = vmatpush1.msra.mxu0 0.0
    %810 = vmatprep.subr.mxu0 0.0
    %811 = vmatpush1.msra.mxu0 0.0
    %812 = vmatprep.subr.mxu0 0.0
    %813 = vmatpush1.msra.mxu0 0.0
    %814 = vmatprep.subr.mxu0 0.0
    %815 = vmatpush1.msra.mxu0 0.0
    %816 = vmatprep.subr.mxu0 0.0
    %817 = vmatpush1.msra.mxu0 0.0
    %818 = vmatprep.subr.mxu0 0.0
    %819 = vmatpush1.msra.mxu0 0.0
    %820 = vmatprep.subr.mxu0 0.0
    %821 = vmatpush1.msra.mxu0 0.0
    %822 = vmatprep.subr.mxu0 0.0
    %823 = vmatpush1.msra.mxu0 0.0
    %824 = vmatprep.subr.mxu0 0.0
    %825 = vmatpush1.msra.mxu0 0.0
    %826 = vmatprep.subr.mxu0 0.0
    %827 = vmatpush1.msra.mxu0 0.0
    %828 = vmatprep.subr.mxu0 0.0
    %829 = vmatpush1.msra.mxu0 0.0
    %830 = vmatprep.subr.mxu0 0.0
    %831 = vmatpush1.msra.mxu0 0.0
    %832 = vmatprep.subr.mxu0 0.0
    %833 = vmatpush1.msra.mxu0 0.0
    %834 = vmatprep.subr.mxu0 0.0
    %835 = vmatpush1.msra.mxu0 0.0
    %836 = vmatprep.subr.mxu0 0.0
    %837 = vmatpush1.msra.mxu0 0.0
    %838 = vmatprep.mubr.f32.mxu0 0.0
    %v839 = vand.u32 %v32, 4294901760
    %v840 = vsub.f32 %v32, %v839
    %v841 = vand.u32 %v840, 4294901760
    %842 = vmatmul.mubr.f32.gmra.mrb[0].mxu0 %v841
    %v843 = vpop.f32.mrb[0].mxu0
    %v844 = vadd.f32 %v768, %v843
    %v845 = vpop.f32.mrb[0].mxu0
    %v846 = vadd.f32 %v770, %v845
    %847 = vdwg.mxu0
    %v848 = vand.u32 %v533, 4294901760
    %v849 = vsub.f32 %v533, %v848
    %v850 = vand.u32 %v849, 4294901760
    %851 = vmatprep.subr.mxu0 %v850
    %v852 = vand.u32 %v531, 4294901760
    %v853 = vsub.f32 %v531, %v852
    %v854 = vand.u32 %v853, 4294901760
    %855 = vmatpush1.msra.mxu0 %v854
    %856 = vmatprep.subr.mxu0 0.0
    %857 = vmatpush1.msra.mxu0 0.0
    %858 = vmatprep.subr.mxu0 0.0
    %859 = vmatpush1.msra.mxu0 0.0
    %860 = vmatprep.subr.mxu0 0.0
    %861 = vmatpush1.msra.mxu0 0.0
    %862 = vmatprep.subr.mxu0 0.0
    %863 = vmatpush1.msra.mxu0 0.0
    %864 = vmatprep.subr.mxu0 0.0
    %865 = vmatpush1.msra.mxu0 0.0
    %866 = vmatprep.subr.mxu0 0.0
    %867 = vmatpush1.msra.mxu0 0.0
    %868 = vmatprep.subr.mxu0 0.0
    %869 = vmatpush1.msra.mxu0 0.0
    %870 = vmatprep.subr.mxu0 0.0
    %871 = vmatpush1.msra.mxu0 0.0
    %872 = vmatprep.subr.mxu0 0.0
    %873 = vmatpush1.msra.mxu0 0.0
    %874 = vmatprep.subr.mxu0 0.0
    %875 = vmatpush1.msra.mxu0 0.0
    %876 = vmatprep.subr.mxu0 0.0
    %877 = vmatpush1.msra.mxu0 0.0
    %878 = vmatprep.subr.mxu0 0.0
    %879 = vmatpush1.msra.mxu0 0.0
    %880 = vmatprep.subr.mxu0 0.0
    %881 = vmatpush1.msra.mxu0 0.0
    %882 = vmatprep.subr.mxu0 0.0
    %883 = vmatpush1.msra.mxu0 0.0
    %884 = vmatprep.subr.mxu0 0.0
    %885 = vmatpush1.msra.mxu0 0.0
    %886 = vmatprep.subr.mxu0 0.0
    %887 = vmatpush1.msra.mxu0 0.0
    %888 = vmatprep.subr.mxu0 0.0
    %889 = vmatpush1.msra.mxu0 0.0
    %890 = vmatprep.subr.mxu0 0.0
    %891 = vmatpush1.msra.mxu0 0.0
    %892 = vmatprep.subr.mxu0 0.0
    %893 = vmatpush1.msra.mxu0 0.0
    %894 = vmatprep.subr.mxu0 0.0
    %895 = vmatpush1.msra.mxu0 0.0
    %896 = vmatprep.subr.mxu0 0.0
    %897 = vmatpush1.msra.mxu0 0.0
    %898 = vmatprep.subr.mxu0 0.0
    %899 = vmatpush1.msra.mxu0 0.0
    %900 = vmatprep.subr.mxu0 0.0
    %901 = vmatpush1.msra.mxu0 0.0
    %902 = vmatprep.subr.mxu0 0.0
    %903 = vmatpush1.msra.mxu0 0.0
    %904 = vmatprep.subr.mxu0 0.0
    %905 = vmatpush1.msra.mxu0 0.0
    %906 = vmatprep.subr.mxu0 0.0
    %907 = vmatpush1.msra.mxu0 0.0
    %908 = vmatprep.subr.mxu0 0.0
    %909 = vmatpush1.msra.mxu0 0.0
    %910 = vmatprep.subr.mxu0 0.0
    %911 = vmatpush1.msra.mxu0 0.0
    %912 = vmatprep.subr.mxu0 0.0
    %913 = vmatpush1.msra.mxu0 0.0
    %914 = vmatprep.subr.mxu0 0.0
    %915 = vmatpush1.msra.mxu0 0.0
    %916 = vmatprep.subr.mxu0 0.0
    %917 = vmatpush1.msra.mxu0 0.0
    %918 = vmatprep.mubr.f32.mxu0 0.0
    %v919 = vand.u32 %v32, 4294901760
    %920 = vmatmul.mubr.f32.gmra.mrb[0].mxu0 %v919
    %v921 = vpop.f32.mrb[0].mxu0
    %v922 = vadd.f32 %v844, %v921
    %v923 = vpop.f32.mrb[0].mxu0
    %v924 = vadd.f32 %v846, %v923
    %925 = vdwg.mxu0
    %v926 = vand.u32 %v533, 4294901760
    %927 = vmatprep.subr.mxu0 %v926
    %v928 = vand.u32 %v531, 4294901760
    %929 = vmatpush1.msra.mxu0 %v928
    %930 = vmatprep.subr.mxu0 0.0
    %931 = vmatpush1.msra.mxu0 0.0
    %932 = vmatprep.subr.mxu0 0.0
    %933 = vmatpush1.msra.mxu0 0.0
    %934 = vmatprep.subr.mxu0 0.0
    %935 = vmatpush1.msra.mxu0 0.0
    %936 = vmatprep.subr.mxu0 0.0
    %937 = vmatpush1.msra.mxu0 0.0
    %938 = vmatprep.subr.mxu0 0.0
    %939 = vmatpush1.msra.mxu0 0.0
    %940 = vmatprep.subr.mxu0 0.0
    %941 = vmatpush1.msra.mxu0 0.0
    %942 = vmatprep.subr.mxu0 0.0
    %943 = vmatpush1.msra.mxu0 0.0
    %944 = vmatprep.subr.mxu0 0.0
    %945 = vmatpush1.msra.mxu0 0.0
    %946 = vmatprep.subr.mxu0 0.0
    %947 = vmatpush1.msra.mxu0 0.0
    %948 = vmatprep.subr.mxu0 0.0
    %949 = vmatpush1.msra.mxu0 0.0
    %950 = vmatprep.subr.mxu0 0.0
    %951 = vmatpush1.msra.mxu0 0.0
    %952 = vmatprep.subr.mxu0 0.0
    %953 = vmatpush1.msra.mxu0 0.0
    %954 = vmatprep.subr.mxu0 0.0
    %955 = vmatpush1.msra.mxu0 0.0
    %956 = vmatprep.subr.mxu0 0.0
    %957 = vmatpush1.msra.mxu0 0.0
    %958 = vmatprep.subr.mxu0 0.0
    %959 = vmatpush1.msra.mxu0 0.0
    %960 = vmatprep.subr.mxu0 0.0
    %961 = vmatpush1.msra.mxu0 0.0
    %962 = vmatprep.subr.mxu0 0.0
    %963 = vmatpush1.msra.mxu0 0.0
    %964 = vmatprep.subr.mxu0 0.0
    %965 = vmatpush1.msra.mxu0 0.0
    %966 = vmatprep.subr.mxu0 0.0
    %967 = vmatpush1.msra.mxu0 0.0
    %968 = vmatprep.subr.mxu0 0.0
    %969 = vmatpush1.msra.mxu0 0.0
    %970 = vmatprep.subr.mxu0 0.0
    %971 = vmatpush1.msra.mxu0 0.0
    %972 = vmatprep.subr.mxu0 0.0
    %973 = vmatpush1.msra.mxu0 0.0
    %974 = vmatprep.subr.mxu0 0.0
    %975 = vmatpush1.msra.mxu0 0.0
    %976 = vmatprep.subr.mxu0 0.0
    %977 = vmatpush1.msra.mxu0 0.0
    %978 = vmatprep.subr.mxu0 0.0
    %979 = vmatpush1.msra.mxu0 0.0
    %980 = vmatprep.subr.mxu0 0.0
    %981 = vmatpush1.msra.mxu0 0.0
    %982 = vmatprep.subr.mxu0 0.0
    %983 = vmatpush1.msra.mxu0 0.0
    %984 = vmatprep.subr.mxu0 0.0
    %985 = vmatpush1.msra.mxu0 0.0
    %986 = vmatprep.subr.mxu0 0.0
    %987 = vmatpush1.msra.mxu0 0.0
    %988 = vmatprep.subr.mxu0 0.0
    %989 = vmatpush1.msra.mxu0 0.0
    %990 = vmatprep.subr.mxu0 0.0
    %991 = vmatpush1.msra.mxu0 0.0
    %992 = vmatprep.mubr.f32.mxu0 0.0
    %v993 = vand.u32 %v32, 4294901760
    %994 = vmatmul.mubr.f32.gmra.mrb[0].mxu0 %v993
    %v995 = vpop.f32.mrb[0].mxu0
    %v996 = vadd.f32 %v922, %v995
    %v997 = vpop.f32.mrb[0].mxu0
    %v998 = vadd.f32 %v924, %v997
    %999 = vdwg.mxu0
    %v1002 = vcombine.low %v996, %v998
    %v1004 = vunpack.c.l.s4 1966171168
    %v1005 = vunpack.c.0.s8 %v1004
    %v1006 = vlaneseq
    %v1007 = vshrl.u32 %v1006, 7
    %v1008 = vsub.s32 %v1005, %v1007
    %v1009 = vrot.slane %v1002, %v1008
    %v1011 = vunpack.c.l.s4 1966171168
    %v1012 = vunpack.c.0.s8 %v1011
    %v1013 = vlaneseq
    %v1014 = vshrl.u32 %v1013, 7
    %v1015 = vsub.s32 %v1012, %v1014
    %v1016 = vrot.slane %v1009, %v1015
    %s1018 = scalar_lea.vmem [#allocation5], 2
    %1019 = vst.msk [vmem:[%s1018] sm:$0x3] %vm525, %v1016
    // Predicated region
    $region14: #{tpu_custom_call.1} parent=1 // pred_check
      _
    $region15: #{tpu_custom_call.1} parent=1 // pred_check_branch
      %1021 = sbr.rel (0) target = $region17
    $region16: #{tpu_custom_call.1} parent=1 // pred_region
      %s1023 = ssub.s32 64, 64
      %1024 = vsyncadd [#allocation4], %s1023
      %s1025 = sshll.u32 [#allocation5], 4
      %s1026 = int_to_ptr.vmem [resolvable:$true] %s1025
      %1031 = dma.vmem_to_hbm [thread:$0]  %s1026, 64, %s2, [#allocation4], 32, 32, 2
    $region17: #{tpu_custom_call.1} parent=1 // pred_fallthru
      _
    // Predicated region
    $region18: #{tpu_custom_call.1} parent=1 // pred_check
      _
    $region19: #{tpu_custom_call.1} parent=1 // pred_check_branch
      %1033 = sbr.rel (0) target = $region21
    $region20: #{tpu_custom_call.1} parent=1 // pred_region
      %1034 = dma.done [#allocation4], 64
    $region21: #{tpu_custom_call.1} parent=1 // pred_fallthru
      _
    %1035 = vsyncpa [#allocation3], 1
    %1036 = vsyncpa [#allocation4], 1

</llo_original>
